<compile_context>
chip_gen: v5e
topology: v5e:2x2
jax: 0.10.0
libtpu: 0.0.40
codegen_flags: <defaults>
</compile_context>

<pallas_src>
import functools

import jax
import jax.numpy as jnp
from jax.experimental import pallas as pl
from jax.experimental.pallas import tpu as pltpu

LANE_PACK = 512        # lane-dense packing width for SI slabs (multiple of 128)
SUBLANE = 8
SI_BLOCK_ROWS = 512    # 1 MiB blocks: safe everywhere; use 1024 on v7x/v6e
F32 = jnp.float32


def _pick_tile(dim, cap, aligns):
    """Largest tile <= cap that divides dim, preferring large alignments."""
    if dim <= cap:
        return dim                      # full extent is always a legal block
    for a in aligns:
        t = (cap // a) * a
        while t >= a:
            if dim % t == 0:
                return t
            t -= a
    return dim


# ----------------------------------------------------------------------------
# Kernel 1: forward fc layer with XdG gating  (tiled MXU matmul)
#   h = relu(x @ W^T + b) * excit
# W is pre-transposed/cast ONCE (prepare_xdg_fc_params); the kernel accumulates
# into the resident f32 output block (no acc scratch, no in-kernel transpose).
# ----------------------------------------------------------------------------
def xdg_fc_kernel(x_ref, w_ref, b_ref, excit_ref, o_ref):
    k = pl.program_id(2)

    @pl.when(k == 0)
    def _():
        o_ref[...] = jnp.zeros_like(o_ref)

    o_ref[...] += jnp.dot(x_ref[...], w_ref[...],
                          preferred_element_type=jnp.float32)

    @pl.when(k == pl.num_programs(2) - 1)
    def _():
        h = o_ref[...] + b_ref[...]        # (1, tn) broadcasts over rows
        h = jnp.maximum(h, 0.0)
        o_ref[...] = h * excit_ref[...]


def prepare_xdg_fc_params(weight, bias, excit, *, compute_dtype=jnp.bfloat16):
    """One-time (parameter-init / task-boundary) prep of the fc layer.

    Stores the weight persistently as (D, H) in the MXU compute dtype so the
    per-step forward never re-reads/transposes/casts W in HBM.
    """
    H, _ = weight.shape
    w_t = weight.T.astype(compute_dtype)       # (D, H): transpose + cast ONCE
    b2 = bias.reshape(1, H).astype(F32)
    e2 = excit.reshape(1, H).astype(F32)
    return w_t, b2, e2


def xdg_fc_forward(x_c, w_t, b2, e2, *, tm=None, tn=None, tk=None):
    """x_c: (B, D) activations already in the compute dtype (cast once/step)."""
    B, D = x_c.shape
    D2, H = w_t.shape
    assert D == D2

    tm = tm if tm is not None else _pick_tile(B, 256, (8,))
    tn = tn if tn is not None else _pick_tile(H, 256, (256, 128, 8))
    tk = tk if tk is not None else _pick_tile(D, 1024, (256, 128, 8))
    assert B % tm == 0 and H % tn == 0 and D % tk == 0

    grid = (B // tm, H // tn, D // tk)
    return pl.pallas_call(
        xdg_fc_kernel,
        out_shape=jax.ShapeDtypeStruct((B, H), F32),
        grid=grid,
        in_specs=[
            pl.BlockSpec((tm, tk), lambda i, j, k: (i, k)),
            pl.BlockSpec((tk, tn), lambda i, j, k: (k, j)),
            pl.BlockSpec((1, tn), lambda i, j, k: (0, j)),
            pl.BlockSpec((1, tn), lambda i, j, k: (0, j)),
        ],
        out_specs=pl.BlockSpec((tm, tn), lambda i, j, k: (i, j)),
        compiler_params=pltpu.CompilerParams(
            dimension_semantics=("parallel", "parallel", "arbitrary")),
    )(x_c, w_t, b2, e2)


# ----------------------------------------------------------------------------
# Kernel 2: fused SI update_omega + surrogate_loss over the packed slab
#   omega_new = omega + W * 1/((p - p_prev)^2 + epsilon)   (written in place)
#   loss      = sum( omega_new * (p - p_prev)^2 )          (per-block partials)
# Zero padding is neutral (W_pad = 0, omega_pad = 0, d_pad = 0).
# ----------------------------------------------------------------------------
def si_fused_kernel(w_ref, p_ref, prev_ref, omega_ref, omega_out_ref,
                    partial_ref, *, epsilon):
    d = p_ref[...] - prev_ref[...]
    d2 = d * d
    # Exact reciprocal -> EUP slot; keeps the VALU free and the kernel HBM-bound
    # even on v7x's 3.2 TB/s HBM.  (approx=True would break the 1e-5 tolerance.)
    omega_new = omega_ref[...] + w_ref[...] * pl.reciprocal(d2 + epsilon,
                                                            approx=False)
    omega_out_ref[...] = omega_new

    prod = omega_new * d2
    br, lanes = prod.shape
    # Fold (br, lanes) into an (8, lanes) partial with pure vreg adds (VPU);
    # the single cross-lane reduction happens once, outside, on tiny partials.
    partial_ref[...] = jnp.sum(prod.reshape(br // SUBLANE, SUBLANE, lanes),
                               axis=0)


def si_update_omega_and_loss(w_slab, p_slab, prev_slab, omega_slab, epsilon,
                             *, block_rows_cap=SI_BLOCK_ROWS):
    """Fused update_omega + surrogate_loss on packed (rows, LANE_PACK) slabs.

    NOTE: omega_slab is donated (input_output_aliases); callers must use only
    the returned omega slab afterwards.
    """
    rows, lanes = p_slab.shape
    assert lanes % 128 == 0 and rows % SUBLANE == 0
    block_rows = min(rows, block_rows_cap)
    assert block_rows % SUBLANE == 0 and rows % block_rows == 0

    grid = (rows // block_rows,)
    blk = pl.BlockSpec((block_rows, lanes), lambda i: (i, 0))
    part_blk = pl.BlockSpec((SUBLANE, lanes), lambda i: (i, 0))

    # 4 inputs + 1 slab output, double-buffered (+ partials, headroom); make the
    # scoped-VMEM limit explicit so 2 MiB blocks (block_rows_cap=1024 on v7x)
    # don't trip the 16/32 MiB defaults.  Capped well under v7x's 64 MiB VMEM.
    block_bytes = block_rows * lanes * 4
    vmem_limit = int(min(max(14 * block_bytes + (2 << 20), 16 << 20), 48 << 20))

    omega_new, partials = pl.pallas_call(
        functools.partial(si_fused_kernel, epsilon=epsilon),
        out_shape=(jax.ShapeDtypeStruct((rows, lanes), F32),
                   jax.ShapeDtypeStruct((grid[0] * SUBLANE, lanes), F32)),
        grid=grid,
        in_specs=[blk, blk, blk, blk],
        out_specs=(blk, part_blk),
        input_output_aliases={3: 0},   # omega buffer is updated in place
        compiler_params=pltpu.CompilerParams(
            dimension_semantics=("parallel",),
            vmem_limit_bytes=vmem_limit),
    )(w_slab, p_slab, prev_slab, omega_slab)

    return omega_new, jnp.sum(partials)


# ----------------------------------------------------------------------------
# Glue: flatten named parameters into a lane-dense (rows, LANE_PACK) f32 slab.
# Called ONCE per task boundary; the packed slabs are the canonical persistent
# storage for omega / prev-task params / W (never re-packed per step).
# ----------------------------------------------------------------------------
def pack_params(param_list, *, block_rows_cap=SI_BLOCK_ROWS):
    assert block_rows_cap % SUBLANE == 0
    flat = jnp.concatenate([p.reshape(-1).astype(F32) for p in param_list])
    n = flat.shape[0]
    block_elems = block_rows_cap * LANE_PACK
    pad_to = block_elems if n > block_elems else SUBLANE * LANE_PACK
    pad = (-n) % pad_to
    flat = jnp.pad(flat, (0, pad))
    return flat.reshape(-1, LANE_PACK), n


# ----------------------------------------------------------------------------
# XdG mask construction (mirror of define_XdGmask / apply_XdGmask)
# ----------------------------------------------------------------------------
def make_xdg_mask(key, n_units, gating_prop):
    n_gated = int(gating_prop * n_units)
    gated = jax.random.permutation(key, n_units)[:n_gated]
    return jnp.ones((n_units,), F32).at[gated].set(0.0)


if __name__ == "__main__":
    key = jax.random.PRNGKey(0)
    k_x, k_w, k_b, k_prev, k_W, k_mask = jax.random.split(key, 6)

    # --- small, deterministic problem ---
    B, D, H = 64, 256, 256        # batch, input features, hidden units
    epsilon = 0.1                 # ContinualLearner.epsilon
    gating_prop = 0.5             # XdG gating proportion

    x = jax.random.normal(k_x, (B, D), F32)
    weight = jax.random.normal(k_w, (H, D), F32) * 0.1     # fc weight
    bias = jax.random.normal(k_b, (H,), F32) * 0.1         # fc bias

    # SI buffers: previous-task params, per-param contribution W, current omega
    params = [weight, bias]
    prev_params = [p + 0.05 * jax.random.normal(k_prev, p.shape, F32)
                   for p in params]
    W_contrib = [jnp.abs(jax.random.normal(k_W, p.shape, F32)) for p in params]
    omega_init = [jnp.zeros_like(p) for p in params]

    # Pack ONCE (task boundary).  Small row cap so the demo runs a multi-block
    # (3-step) parallel grid; production keeps SI_BLOCK_ROWS=512 (or 1024 on
    # v7x/v6e), with the packed slabs as persistent storage.
    SI_CAP = 64
    p_slab, _ = pack_params(params, block_rows_cap=SI_CAP)
    prev_slab, _ = pack_params(prev_params, block_rows_cap=SI_CAP)
    w_slab, _ = pack_params(W_contrib, block_rows_cap=SI_CAP)
    omega_slab, _ = pack_params(omega_init, block_rows_cap=SI_CAP)

    excit = make_xdg_mask(k_mask, H, gating_prop)

    # One-time fc parameter prep (weight transposed + cast once, not per call).
    w_t, b2, e2 = prepare_xdg_fc_params(weight, bias, excit)
    x_bf = x.astype(jnp.bfloat16)           # cast activations once per step

    # --- pure-JAX references (computed BEFORE the fused kernel, because the
    #     omega slab is donated / aliased into it) ---
    d_slab = p_slab - prev_slab
    omega_ref = omega_slab + w_slab / (d_slab * d_slab + epsilon)
    loss_ref = jnp.sum(omega_ref * d_slab * d_slab)
    hidden_ref = jnp.maximum(
        jnp.dot(x_bf, w_t, preferred_element_type=F32) + bias[None, :], 0.0
    ) * excit[None, :]
    jax.block_until_ready((omega_ref, loss_ref, hidden_ref))

    # --- fused update_omega + surrogate_loss (Pallas, omega updated in place) ---
    omega_new_slab, loss = si_update_omega_and_loss(
        w_slab, p_slab, prev_slab, omega_slab, epsilon, block_rows_cap=SI_CAP)
    omega_new_slab, loss = jax.block_until_ready((omega_new_slab, loss))

    # --- forward with XdG gating (Pallas tiled bf16 MXU matmul, f32 accumulate;
    #     full-extent blocks at this size -> single grid step) ---
    hidden = xdg_fc_forward(x_bf, w_t, b2, e2)
    hidden = jax.block_until_ready(hidden)

    assert jnp.allclose(omega_new_slab, omega_ref, rtol=1e-5, atol=1e-5)
    assert jnp.allclose(loss, loss_ref, rtol=1e-4, atol=1e-4)
    assert jnp.allclose(hidden, hidden_ref, rtol=1e-3, atol=1e-3)

    # TODO(synk): forward() is abstract in ContinualLearner; the fc+XdG gating
    # kernel above is the canonical instantiation its subclasses use.  The
    # remaining attributes (replay_targets, KD_temp, habituation, slowness)
    # carry no compute and stay host-side bookkeeping.
    print("KERNEL_OK")
</pallas_src>

<mosaic_0001>
module attributes {stable_mosaic.version = 11 : i64} {
  func.func @si_fused_kernel(%arg0: i32, %arg1: memref<64x512xf32, #tpu.memory_space<vmem>>, %arg2: memref<64x512xf32, #tpu.memory_space<vmem>>, %arg3: memref<64x512xf32, #tpu.memory_space<vmem>>, %arg4: memref<64x512xf32, #tpu.memory_space<vmem>>, %arg5: memref<64x512xf32, #tpu.memory_space<vmem>>, %arg6: memref<8x512xf32, #tpu.memory_space<vmem>>) attributes {dimension_semantics = [#tpu.dimension_semantics<parallel>], iteration_bounds = array<i64: 3>, scalar_prefetch = 0 : i64, scratch_operands = 0 : i64, tpu.core_type = #tpu.core_type<tc>, window_params = [{transform_indices = @transform_0, window_bounds = array<i64: 64, 512>}, {transform_indices = @transform_1, window_bounds = array<i64: 64, 512>}, {transform_indices = @transform_2, window_bounds = array<i64: 64, 512>}, {transform_indices = @transform_3, window_bounds = array<i64: 64, 512>}, {transform_indices = @transform_4, window_bounds = array<i64: 64, 512>}, {transform_indices = @transform_5, window_bounds = array<i64: 8, 512>}]} {
    %c0 = arith.constant 0 : index
    %c0_0 = arith.constant 0 : index
    %0 = vector.load %arg2[%c0, %c0_0] : memref<64x512xf32, #tpu.memory_space<vmem>>, vector<64x512xf32>
    %c0_1 = arith.constant 0 : index
    %c0_2 = arith.constant 0 : index
    %1 = vector.load %arg3[%c0_1, %c0_2] : memref<64x512xf32, #tpu.memory_space<vmem>>, vector<64x512xf32>
    %2 = arith.subf %0, %1 : vector<64x512xf32>
    %3 = arith.mulf %2, %2 : vector<64x512xf32>
    %c0_3 = arith.constant 0 : index
    %c0_4 = arith.constant 0 : index
    %4 = vector.load %arg4[%c0_3, %c0_4] : memref<64x512xf32, #tpu.memory_space<vmem>>, vector<64x512xf32>
    %c0_5 = arith.constant 0 : index
    %c0_6 = arith.constant 0 : index
    %5 = vector.load %arg1[%c0_5, %c0_6] : memref<64x512xf32, #tpu.memory_space<vmem>>, vector<64x512xf32>
    %cst = arith.constant 1.000000e-01 : f32
    %6 = vector.broadcast %cst : f32 to vector<64x512xf32>
    %7 = arith.addf %3, %6 : vector<64x512xf32>
    %8 = tpu.reciprocal %7 : vector<64x512xf32> -> vector<64x512xf32>
    %9 = arith.mulf %5, %8 : vector<64x512xf32>
    %10 = arith.addf %4, %9 : vector<64x512xf32>
    %c0_7 = arith.constant 0 : index
    %c0_8 = arith.constant 0 : index
    %11 = vector.load %arg5[%c0_7, %c0_8] : memref<64x512xf32, #tpu.memory_space<vmem>>, vector<64x512xf32>
    tpu.vector_store %arg5[%c0_7, %c0_8], %10 {strides = array<i32>} : memref<64x512xf32, #tpu.memory_space<vmem>>, vector<64x512xf32>,
    %12 = arith.mulf %10, %3 : vector<64x512xf32>
    %13 = vector.shape_cast %12 : vector<64x512xf32> to vector<8x8x512xf32>
    %cst_9 = arith.constant dense<0.000000e+00> : vector<8x512xf32>
    %14 = vector.multi_reduction <add>, %13, %cst_9 [0] : vector<8x8x512xf32> to vector<8x512xf32>
    %c0_10 = arith.constant 0 : index
    %c0_11 = arith.constant 0 : index
    %15 = vector.load %arg6[%c0_10, %c0_11] : memref<8x512xf32, #tpu.memory_space<vmem>>, vector<8x512xf32>
    tpu.vector_store %arg6[%c0_10, %c0_11], %14 {strides = array<i32>} : memref<8x512xf32, #tpu.memory_space<vmem>>, vector<8x512xf32>,
    return
  }
  func.func @transform_0(%arg0: i32) -> (i32, i32) {
    %c0_i32 = arith.constant 0 : i32
    %c0_i32_0 = arith.constant 0 : i32
    return %arg0, %c0_i32 : i32, i32
  }
  func.func @transform_1(%arg0: i32) -> (i32, i32) {
    %c0_i32 = arith.constant 0 : i32
    %c0_i32_0 = arith.constant 0 : i32
    return %arg0, %c0_i32 : i32, i32
  }
  func.func @transform_2(%arg0: i32) -> (i32, i32) {
    %c0_i32 = arith.constant 0 : i32
    %c0_i32_0 = arith.constant 0 : i32
    return %arg0, %c0_i32 : i32, i32
  }
  func.func @transform_3(%arg0: i32) -> (i32, i32) {
    %c0_i32 = arith.constant 0 : i32
    %c0_i32_0 = arith.constant 0 : i32
    return %arg0, %c0_i32 : i32, i32
  }
  func.func @transform_4(%arg0: i32) -> (i32, i32) {
    %c0_i32 = arith.constant 0 : i32
    %c0_i32_0 = arith.constant 0 : i32
    return %arg0, %c0_i32 : i32, i32
  }
  func.func @transform_5(%arg0: i32) -> (i32, i32) {
    %c0_i32 = arith.constant 0 : i32
    %c0_i32_0 = arith.constant 0 : i32
    return %arg0, %c0_i32 : i32, i32
  }
}

</mosaic_0001>

<llo_original>
// kernel: tpu_custom_call.1
$region0: #{tpu_custom_call.1}
  #allocation0 [shape = 'u32[]', space=smem, size = 0x4, offset = 0x4, fixed_abs, tag = 'smem constant byte address 0x4 - core index']
  #allocation1 [shape = 'u32[72,128]{1,0:T(1,128)}', space=vmem, size = 0x9000, scoped, tag = 'internal scratch']
  %s0 = inlined_call_operand.vmem [shape: f32[192,512], index: 0, kind: input, shape index: {}]
  %s1 = inlined_call_operand.vmem [shape: f32[192,512], index: 1, kind: input, shape index: {}]
  %s2 = inlined_call_operand.hbm [shape: f32[192,512], index: 2, kind: input, shape index: {}]
  %s3 = inlined_call_operand.hbm [shape: f32[192,512], index: 3, kind: input, shape index: {}, may-alias: {3,4}]
  %s4 = inlined_call_operand.hbm [shape: f32[192,512], index: 4, kind: output, shape index: {0}, may-alias: {3,4}]
  %s5 = inlined_call_operand.hbm [shape: f32[24,512], index: 5, kind: output, shape index: {1}]
  %6 = xla_tuple %s4, %s5
  %s7 = sld [smem:[#allocation0]]
  $region65: #{tpu_custom_call.1} parent=0
    _
  %s9 = ssub.s32 1, %s7
  %s10 = scalar_select 0, %s9, %s7
  $region1: #{tpu_custom_call.1} parent=0
    #allocation2 [shape = 'u8[262144]{0}', space=vmem, size = 0x40000, scoped, tag = 'input window, operand 2']
    #allocation3 [shape = 's32[2]{0}', space=sflag, size = 0x8, scoped, tag = 'scoped memory for tpu_custom_call.1']
    #allocation4 [shape = 's32[2]{0}', space=sflag, size = 0x8, scoped, tag = 'scoped memory for tpu_custom_call.1']
    #allocation5 [shape = 'u8[262144]{0}', space=vmem, size = 0x40000, scoped, tag = 'input window, operand 3']
    #allocation6 [shape = 's32[2]{0}', space=sflag, size = 0x8, scoped, tag = 'scoped memory for tpu_custom_call.1']
    #allocation7 [shape = 'u8[262144]{0}', space=vmem, size = 0x40000, scoped, tag = 'output window, operand 0']
    #allocation8 [shape = 'u8[32768]{0}', space=vmem, size = 0x8000, scoped, tag = 'output window, operand 1']
    #allocation9 [shape = 's32[2]{0}', space=sflag, size = 0x8, scoped, tag = 'scoped memory for tpu_custom_call.1']
    %11 = vsyncpa [#allocation3], 0
    %s12 = scalar_lea.sflag [#allocation3], 1
    %13 = vsyncpa %s12, 0
    %14 = vsyncpa [#allocation6], 0
    %s15 = scalar_lea.sflag [#allocation6], 1
    %16 = vsyncpa %s15, 0
    %17 = vsyncpa [#allocation4], 0
    %s18 = scalar_lea.sflag [#allocation4], 1
    %19 = vsyncpa %s18, 0
    %20 = vsyncpa [#allocation9], 0
    %s21 = scalar_lea.sflag [#allocation9], 1
    %22 = vsyncpa %s21, 0
    loop: start=0, step=1, limit=5
    $region2: #{tpu_custom_call.1} parent=1 // loop_pre_header
      _
    $region3: #{tpu_custom_call.1} parent=1 // loop_header
      %s24 = sphi 0, %s28
      %p25 = scmp.ge.s32.totalorder %s24, 5
      %s34 = sphi 0, %s36
      %s37 = sphi 0, %s34
      %s38 = sphi 0, %s37
      %s54 = sphi 0, %s38
      %s60 = sphi 0, %s62
      %s63 = sphi 0, %s60
      %s64 = sphi 0, %s63
      %s80 = sphi 0, %s64
      %s86 = sphi 0, %s88
      %s89 = sphi 0, %s86
      %s90 = sphi 0, %s89
      %s106 = sphi 0, %s90
      %s112 = sphi 0, %s114
      %s115 = sphi 0, %s112
      %s116 = sphi 0, %s115
      %s132 = sphi 0, %s116
      %s138 = sphi 0, %s140
      %s141 = sphi 0, %s138
      %s142 = sphi 0, %s141
      %s158 = sphi 0, %s142
      %s164 = sphi 0, %s166
      %s167 = sphi 0, %s164
      %s168 = sphi 0, %s167
      %s184 = sphi 0, %s168
    $region4: #{tpu_custom_call.1} parent=1 // loop_header_branch
      %27 = sbr.rel (%p25) target = $region8
    $region5: #{tpu_custom_call.1} parent=1 // loop_body
      %s29 = ssub.s32 %s24, 1
      %s30 = ssub.s32 %s24, 2
      %s31 = sadd.s32 %s24, 1
      %s32 = ssub.s32 %s24, %s31
      %p33 = scmp.eq.s32.totalorder %s32, 0
      %s35 = sadd.s32 %s34, 1
      %s36 = scalar_select %p33, %s34, %s35
      %p39 = pneg %p33
      %p40 = scmp.eq.s32.totalorder %s24, 2
      %p41 = por %p39, %p40
      %p42 = scmp.ne.s32.totalorder %s34, %s37
      %p43 = scmp.eq.s32.totalorder %s24, 0
      %p44 = por %p42, %p43
      %p45 = scmp.ne.s32.totalorder %s34, %s37
      %p46 = scmp.eq.s32.totalorder %s29, 2
      %p47 = por %p45, %p46
      %p48 = scmp.ne.s32.totalorder %s37, %s38
      %p49 = scmp.eq.s32.totalorder %s29, 0
      %p50 = por %p48, %p49
      %p51 = scmp.ne.s32.totalorder %s37, %s38
      %p52 = scmp.eq.s32.totalorder %s30, 2
      %p53 = por %p51, %p52
      %p55 = scmp.ne.s32.totalorder %s38, %s54
      %p56 = scmp.eq.s32.totalorder %s30, 0
      %p57 = por %p55, %p56
      %s58 = ssub.s32 %s24, %s31
      %p59 = scmp.eq.s32.totalorder %s58, 0
      %s61 = sadd.s32 %s60, 1
      %s62 = scalar_select %p59, %s60, %s61
      %p65 = pneg %p59
      %p66 = scmp.eq.s32.totalorder %s24, 2
      %p67 = por %p65, %p66
      %p68 = scmp.ne.s32.totalorder %s60, %s63
      %p69 = scmp.eq.s32.totalorder %s24, 0
      %p70 = por %p68, %p69
      %p71 = scmp.ne.s32.totalorder %s60, %s63
      %p72 = scmp.eq.s32.totalorder %s29, 2
      %p73 = por %p71, %p72
      %p74 = scmp.ne.s32.totalorder %s63, %s64
      %p75 = scmp.eq.s32.totalorder %s29, 0
      %p76 = por %p74, %p75
      %p77 = scmp.ne.s32.totalorder %s63, %s64
      %p78 = scmp.eq.s32.totalorder %s30, 2
      %p79 = por %p77, %p78
      %p81 = scmp.ne.s32.totalorder %s64, %s80
      %p82 = scmp.eq.s32.totalorder %s30, 0
      %p83 = por %p81, %p82
      %s84 = ssub.s32 %s24, %s31
      %p85 = scmp.eq.s32.totalorder %s84, 0
      %s87 = sadd.s32 %s86, 1
      %s88 = scalar_select %p85, %s86, %s87
      %p91 = pneg %p85
      %p92 = scmp.eq.s32.totalorder %s24, 2
      %p93 = por %p91, %p92
      %p94 = scmp.ne.s32.totalorder %s86, %s89
      %p95 = scmp.eq.s32.totalorder %s24, 0
      %p96 = por %p94, %p95
      %p97 = scmp.ne.s32.totalorder %s86, %s89
      %p98 = scmp.eq.s32.totalorder %s29, 2
      %p99 = por %p97, %p98
      %p100 = scmp.ne.s32.totalorder %s89, %s90
      %p101 = scmp.eq.s32.totalorder %s29, 0
      %p102 = por %p100, %p101
      %p103 = scmp.ne.s32.totalorder %s89, %s90
      %p104 = scmp.eq.s32.totalorder %s30, 2
      %p105 = por %p103, %p104
      %p107 = scmp.ne.s32.totalorder %s90, %s106
      %p108 = scmp.eq.s32.totalorder %s30, 0
      %p109 = por %p107, %p108
      %s110 = ssub.s32 %s24, %s31
      %p111 = scmp.eq.s32.totalorder %s110, 0
      %s113 = sadd.s32 %s112, 1
      %s114 = scalar_select %p111, %s112, %s113
      %p117 = pneg %p111
      %p118 = scmp.eq.s32.totalorder %s24, 2
      %p119 = por %p117, %p118
      %p120 = scmp.ne.s32.totalorder %s112, %s115
      %p121 = scmp.eq.s32.totalorder %s24, 0
      %p122 = por %p120, %p121
      %p123 = scmp.ne.s32.totalorder %s112, %s115
      %p124 = scmp.eq.s32.totalorder %s29, 2
      %p125 = por %p123, %p124
      %p126 = scmp.ne.s32.totalorder %s115, %s116
      %p127 = scmp.eq.s32.totalorder %s29, 0
      %p128 = por %p126, %p127
      %p129 = scmp.ne.s32.totalorder %s115, %s116
      %p130 = scmp.eq.s32.totalorder %s30, 2
      %p131 = por %p129, %p130
      %p133 = scmp.ne.s32.totalorder %s116, %s132
      %p134 = scmp.eq.s32.totalorder %s30, 0
      %p135 = por %p133, %p134
      %s136 = ssub.s32 %s24, %s31
      %p137 = scmp.eq.s32.totalorder %s136, 0
      %s139 = sadd.s32 %s138, 1
      %s140 = scalar_select %p137, %s138, %s139
      %p143 = pneg %p137
      %p144 = scmp.eq.s32.totalorder %s24, 2
      %p145 = por %p143, %p144
      %p146 = scmp.ne.s32.totalorder %s138, %s141
      %p147 = scmp.eq.s32.totalorder %s24, 0
      %p148 = por %p146, %p147
      %p149 = scmp.ne.s32.totalorder %s138, %s141
      %p150 = scmp.eq.s32.totalorder %s29, 2
      %p151 = por %p149, %p150
      %p152 = scmp.ne.s32.totalorder %s141, %s142
      %p153 = scmp.eq.s32.totalorder %s29, 0
      %p154 = por %p152, %p153
      %p155 = scmp.ne.s32.totalorder %s141, %s142
      %p156 = scmp.eq.s32.totalorder %s30, 2
      %p157 = por %p155, %p156
      %p159 = scmp.ne.s32.totalorder %s142, %s158
      %p160 = scmp.eq.s32.totalorder %s30, 0
      %p161 = por %p159, %p160
      %s162 = ssub.s32 %s24, %s31
      %p163 = scmp.eq.s32.totalorder %s162, 0
      %s165 = sadd.s32 %s164, 1
      %s166 = scalar_select %p163, %s164, %s165
      %p169 = pneg %p163
      %p170 = scmp.eq.s32.totalorder %s24, 2
      %p171 = por %p169, %p170
      %p172 = scmp.ne.s32.totalorder %s164, %s167
      %p173 = scmp.eq.s32.totalorder %s24, 0
      %p174 = por %p172, %p173
      %p175 = scmp.ne.s32.totalorder %s164, %s167
      %p176 = scmp.eq.s32.totalorder %s29, 2
      %p177 = por %p175, %p176
      %p178 = scmp.ne.s32.totalorder %s167, %s168
      %p179 = scmp.eq.s32.totalorder %s29, 0
      %p180 = por %p178, %p179
      %p181 = scmp.ne.s32.totalorder %s167, %s168
      %p182 = scmp.eq.s32.totalorder %s30, 2
      %p183 = por %p181, %p182
      %p185 = scmp.ne.s32.totalorder %s168, %s184
      %p186 = scmp.eq.s32.totalorder %s30, 0
      %p187 = por %p185, %p186
      %p188 = scmp.le.s32.totalorder 1, %s24
      %p189 = scmp.lt.s32.totalorder %s24, 4
      %p190 = pnand %p188, %p189
      %p191 = pneg %p190
      // Predicated region
      $region9: #{tpu_custom_call.1} parent=5 // pred_check
        _
      $region10: #{tpu_custom_call.1} parent=5 // pred_check_branch
        %193 = sbr.rel (%p190) target = $region12
      $region11: #{tpu_custom_call.1} parent=5 // pred_region
        %s194 = ssub.s32 %s24, 1
      $region12: #{tpu_custom_call.1} parent=5 // pred_fallthru
        _
      %p195 = scmp.lt.s32.totalorder %s24, 3
      // Predicated region
      $region13: #{tpu_custom_call.1} parent=5 // pred_check
        %p196 = pneg %p195
      $region14: #{tpu_custom_call.1} parent=5 // pred_check_branch
        %198 = sbr.rel (%p196) target = $region16
      $region15: #{tpu_custom_call.1} parent=5 // pred_region
        // Predicated region
        $region17: #{tpu_custom_call.1} parent=15 // pred_check
          %p199 = pneg %p44
        $region18: #{tpu_custom_call.1} parent=15 // pred_check_branch
          %201 = sbr.rel (%p199) target = $region20
        $region19: #{tpu_custom_call.1} parent=15 // pred_region
          %s202 = smul.u32 8, %s24
          %p203 = scmp.lt.s32.totalorder %s202, 23
          %s204 = scalar_select %p203, %s202, 23
          %s205 = smul.addr %s204, 4
          %s206 = smul.addr %s205, 8
          %s207 = scalar_lea.vmem %s0, %s206
          %s208 = smul.u32 8, %s24
        $region20: #{tpu_custom_call.1} parent=15 // pred_fallthru
          _
        // Predicated region
        $region21: #{tpu_custom_call.1} parent=15 // pred_check
          %p209 = pneg %p70
        $region22: #{tpu_custom_call.1} parent=15 // pred_check_branch
          %211 = sbr.rel (%p209) target = $region24
        $region23: #{tpu_custom_call.1} parent=15 // pred_region
          %s212 = smul.u32 8, %s24
          %p213 = scmp.lt.s32.totalorder %s212, 23
          %s214 = scalar_select %p213, %s212, 23
          %s215 = smul.addr %s214, 4
          %s216 = smul.addr %s215, 8
          %s217 = scalar_lea.vmem %s1, %s216
          %s218 = smul.u32 8, %s24
        $region24: #{tpu_custom_call.1} parent=15 // pred_fallthru
          _
        // Predicated region
        $region25: #{tpu_custom_call.1} parent=15 // pred_check
          %p219 = pneg %p96
        $region26: #{tpu_custom_call.1} parent=15 // pred_check_branch
          %221 = sbr.rel (%p219) target = $region28
        $region27: #{tpu_custom_call.1} parent=15 // pred_region
          %s222 = sand.u32 %s86, 1
          %s223 = scalar_lea.sflag [#allocation3], %s222
          %s224 = sand.u32 %s86, 1
          %s225 = smul.addr %s224, 256
          %s226 = scalar_lea.vmem [#allocation2], %s225
          %s227 = smul.u32 8, %s24
          %229 = vsyncadd %s223, 0
          %s230 = smul.addr %s227, 4
          %s231 = smul.addr %s230, 8
          %s232 = scalar_lea.hbm %s2, %s231
          %s233 = sshll.u32 %s232, 4
          %s234 = int_to_ptr.hbm [resolvable:$true] %s233
          %s235 = sshll.u32 %s226, 4
          %s236 = int_to_ptr.vmem [resolvable:$true] %s235
          %241 = dma.hbm_to_vmem [thread:$0]  %s234, 4096, %s236, %s223, 512, 512, 32
        $region28: #{tpu_custom_call.1} parent=15 // pred_fallthru
          _
        // Predicated region
        $region29: #{tpu_custom_call.1} parent=15 // pred_check
          %p242 = pneg %p122
        $region30: #{tpu_custom_call.1} parent=15 // pred_check_branch
          %244 = sbr.rel (%p242) target = $region32
        $region31: #{tpu_custom_call.1} parent=15 // pred_region
          %s245 = sand.u32 %s112, 1
          %s246 = scalar_lea.sflag [#allocation6], %s245
          %s247 = sand.u32 %s112, 1
          %s248 = smul.addr %s247, 256
          %s249 = scalar_lea.vmem [#allocation5], %s248
          %s250 = smul.u32 8, %s24
          %252 = vsyncadd %s246, 0
          %s253 = smul.addr %s250, 4
          %s254 = smul.addr %s253, 8
          %s255 = scalar_lea.hbm %s3, %s254
          %s256 = sshll.u32 %s255, 4
          %s257 = int_to_ptr.hbm [resolvable:$true] %s256
          %s258 = sshll.u32 %s249, 4
          %s259 = int_to_ptr.vmem [resolvable:$true] %s258
          %264 = dma.hbm_to_vmem [thread:$0]  %s257, 4096, %s259, %s246, 512, 512, 32
        $region32: #{tpu_custom_call.1} parent=15 // pred_fallthru
          _
      $region16: #{tpu_custom_call.1} parent=5 // pred_fallthru
        _
      %p265 = scmp.le.s32.totalorder 1, %s24
      %p266 = scmp.lt.s32.totalorder %s24, 4
      %p267 = pnand %p265, %p266
      %p268 = pneg %p267
      // Predicated region
      $region33: #{tpu_custom_call.1} parent=5 // pred_check
        _
      $region34: #{tpu_custom_call.1} parent=5 // pred_check_branch
        %270 = sbr.rel (%p267) target = $region36
      $region35: #{tpu_custom_call.1} parent=5 // pred_region
        %s271 = ssub.s32 %s24, 1
        %s272 = sand.u32 %s89, 1
        %s273 = scalar_lea.sflag [#allocation3], %s272
        %s274 = sand.u32 %s89, 1
        %s275 = smul.addr %s274, 256
        %s276 = scalar_lea.vmem [#allocation2], %s275
        // Predicated region
        $region37: #{tpu_custom_call.1} parent=35 // pred_check
          %p277 = pneg %p102
        $region38: #{tpu_custom_call.1} parent=35 // pred_check_branch
          %279 = sbr.rel (%p277) target = $region40
        $region39: #{tpu_custom_call.1} parent=35 // pred_region
          %281 = dma.done %s273, 4096
        $region40: #{tpu_custom_call.1} parent=35 // pred_fallthru
          _
        %s282 = sand.u32 %s115, 1
        %s283 = scalar_lea.sflag [#allocation6], %s282
        %s284 = sand.u32 %s115, 1
        %s285 = smul.addr %s284, 256
        %s286 = scalar_lea.vmem [#allocation5], %s285
        // Predicated region
        $region41: #{tpu_custom_call.1} parent=35 // pred_check
          %p287 = pneg %p128
        $region42: #{tpu_custom_call.1} parent=35 // pred_check_branch
          %289 = sbr.rel (%p287) target = $region44
        $region43: #{tpu_custom_call.1} parent=35 // pred_region
          %291 = dma.done %s283, 4096
        $region44: #{tpu_custom_call.1} parent=35 // pred_fallthru
          _
        %s292 = smul.u32 8, %s29
        %p293 = scmp.lt.s32.totalorder %s292, 23
        %s294 = scalar_select %p293, %s292, 23
        %s295 = smul.addr %s294, 4
        %s296 = smul.addr %s295, 8
        %s297 = scalar_lea.vmem %s0, %s296
        %p298 = pneg %p50
        %p299 = pneg %p47
        %s300 = smul.u32 8, %s29
        %p301 = scmp.lt.s32.totalorder %s300, 23
        %s302 = scalar_select %p301, %s300, 23
        %s303 = smul.addr %s302, 4
        %s304 = smul.addr %s303, 8
        %s305 = scalar_lea.vmem %s1, %s304
        %p306 = pneg %p76
        %p307 = pneg %p73
        %s308 = sand.u32 %s89, 1
        %s309 = scalar_lea.sflag [#allocation3], %s308
        %s310 = sand.u32 %s89, 1
        %s311 = smul.addr %s310, 256
        %s312 = scalar_lea.vmem [#allocation2], %s311
        %p313 = pneg %p102
        %p314 = pneg %p99
        %s315 = sand.u32 %s115, 1
        %s316 = scalar_lea.sflag [#allocation6], %s315
        %s317 = sand.u32 %s115, 1
        %s318 = smul.addr %s317, 256
        %s319 = scalar_lea.vmem [#allocation5], %s318
        %p320 = pneg %p128
        %p321 = pneg %p125
        %p322 = pneg %p154
        %p323 = pneg %p151
        %s324 = sand.u32 %s141, 1
        %s325 = scalar_lea.sflag [#allocation4], %s324
        %s326 = sand.u32 %s141, 1
        %s327 = smul.addr %s326, 256
        %s328 = scalar_lea.vmem [#allocation7], %s327
        %p329 = pneg %p180
        %p330 = pneg %p177
        %s331 = sand.u32 %s167, 1
        %s332 = scalar_lea.sflag [#allocation9], %s331
        %s333 = sand.u32 %s167, 1
        %s334 = smul.addr %s333, 32
        %s335 = scalar_lea.vmem [#allocation8], %s334
        %s336 = smul.u32 8, %s29
        %p337 = scmp.lt.s32.totalorder %s336, 23
        %s338 = scalar_select %p337, %s336, 23
        %s339 = smul.addr %s338, 4
        %s340 = smul.addr %s339, 8
        %s341 = scalar_lea.vmem %s0, %s340
        %s342 = smul.u32 8, %s29
        %s343 = smul.u32 8, %s29
        %p344 = scmp.lt.s32.totalorder %s343, 23
        %s345 = scalar_select %p344, %s343, 23
        %s346 = smul.addr %s345, 4
        %s347 = smul.addr %s346, 8
        %s348 = scalar_lea.vmem %s1, %s347
        %s349 = smul.u32 8, %s29
        %s350 = smul.u32 8, %s29
        %s351 = smul.u32 8, %s29
        %s352 = smul.u32 8, %s29
        %v353 = vld [vmem:[%s348] sm:$0xff]
        %v354 = vld [vmem:[%s348 + $0x8] sm:$0xff]
        %v355 = vld [vmem:[%s348 + $0x10] sm:$0xff]
        %v356 = vld [vmem:[%s348 + $0x18] sm:$0xff]
        %v357 = vld [vmem:[%s348 + $0x20] sm:$0xff]
        %v358 = vld [vmem:[%s348 + $0x28] sm:$0xff]
        %v359 = vld [vmem:[%s348 + $0x30] sm:$0xff]
        %v360 = vld [vmem:[%s348 + $0x38] sm:$0xff]
        %v361 = vld [vmem:[%s348 + $0x40] sm:$0xff]
        %v362 = vld [vmem:[%s348 + $0x48] sm:$0xff]
        %v363 = vld [vmem:[%s348 + $0x50] sm:$0xff]
        %v364 = vld [vmem:[%s348 + $0x58] sm:$0xff]
        %v365 = vld [vmem:[%s348 + $0x60] sm:$0xff]
        %v366 = vld [vmem:[%s348 + $0x68] sm:$0xff]
        %v367 = vld [vmem:[%s348 + $0x70] sm:$0xff]
        %v368 = vld [vmem:[%s348 + $0x78] sm:$0xff]
        %v369 = vld [vmem:[%s348 + $0x80] sm:$0xff]
        %v370 = vld [vmem:[%s348 + $0x88] sm:$0xff]
        %v371 = vld [vmem:[%s348 + $0x90] sm:$0xff]
        %v372 = vld [vmem:[%s348 + $0x98] sm:$0xff]
        %v373 = vld [vmem:[%s348 + $0xa0] sm:$0xff]
        %v374 = vld [vmem:[%s348 + $0xa8] sm:$0xff]
        %v375 = vld [vmem:[%s348 + $0xb0] sm:$0xff]
        %v376 = vld [vmem:[%s348 + $0xb8] sm:$0xff]
        %v377 = vld [vmem:[%s348 + $0xc0] sm:$0xff]
        %v378 = vld [vmem:[%s348 + $0xc8] sm:$0xff]
        %v379 = vld [vmem:[%s348 + $0xd0] sm:$0xff]
        %v380 = vld [vmem:[%s348 + $0xd8] sm:$0xff]
        %v381 = vld [vmem:[%s348 + $0xe0] sm:$0xff]
        %v382 = vld [vmem:[%s348 + $0xe8] sm:$0xff]
        %v383 = vld [vmem:[%s348 + $0xf0] sm:$0xff]
        %v384 = vld [vmem:[%s348 + $0xf8] sm:$0xff]
        %v385 = vld [vmem:[%s276] sm:$0xff]
        %v386 = vld [vmem:[%s276 + $0x8] sm:$0xff]
        %v387 = vld [vmem:[%s276 + $0x10] sm:$0xff]
        %v388 = vld [vmem:[%s276 + $0x18] sm:$0xff]
        %v389 = vld [vmem:[%s276 + $0x20] sm:$0xff]
        %v390 = vld [vmem:[%s276 + $0x28] sm:$0xff]
        %v391 = vld [vmem:[%s276 + $0x30] sm:$0xff]
        %v392 = vld [vmem:[%s276 + $0x38] sm:$0xff]
        %v393 = vld [vmem:[%s276 + $0x40] sm:$0xff]
        %v394 = vld [vmem:[%s276 + $0x48] sm:$0xff]
        %v395 = vld [vmem:[%s276 + $0x50] sm:$0xff]
        %v396 = vld [vmem:[%s276 + $0x58] sm:$0xff]
        %v397 = vld [vmem:[%s276 + $0x60] sm:$0xff]
        %v398 = vld [vmem:[%s276 + $0x68] sm:$0xff]
        %v399 = vld [vmem:[%s276 + $0x70] sm:$0xff]
        %v400 = vld [vmem:[%s276 + $0x78] sm:$0xff]
        %v401 = vld [vmem:[%s276 + $0x80] sm:$0xff]
        %v402 = vld [vmem:[%s276 + $0x88] sm:$0xff]
        %v403 = vld [vmem:[%s276 + $0x90] sm:$0xff]
        %v404 = vld [vmem:[%s276 + $0x98] sm:$0xff]
        %v405 = vld [vmem:[%s276 + $0xa0] sm:$0xff]
        %v406 = vld [vmem:[%s276 + $0xa8] sm:$0xff]
        %v407 = vld [vmem:[%s276 + $0xb0] sm:$0xff]
        %v408 = vld [vmem:[%s276 + $0xb8] sm:$0xff]
        %v409 = vld [vmem:[%s276 + $0xc0] sm:$0xff]
        %v410 = vld [vmem:[%s276 + $0xc8] sm:$0xff]
        %v411 = vld [vmem:[%s276 + $0xd0] sm:$0xff]
        %v412 = vld [vmem:[%s276 + $0xd8] sm:$0xff]
        %v413 = vld [vmem:[%s276 + $0xe0] sm:$0xff]
        %v414 = vld [vmem:[%s276 + $0xe8] sm:$0xff]
        %v415 = vld [vmem:[%s276 + $0xf0] sm:$0xff]
        %v416 = vld [vmem:[%s276 + $0xf8] sm:$0xff]
        %v417 = vsub.f32 %v353, %v385
        %v418 = vsub.f32 %v354, %v386
        %v419 = vsub.f32 %v355, %v387
        %v420 = vsub.f32 %v356, %v388
        %v421 = vsub.f32 %v357, %v389
        %v422 = vsub.f32 %v358, %v390
        %v423 = vsub.f32 %v359, %v391
        %v424 = vsub.f32 %v360, %v392
        %v425 = vsub.f32 %v361, %v393
        %v426 = vsub.f32 %v362, %v394
        %v427 = vsub.f32 %v363, %v395
        %v428 = vsub.f32 %v364, %v396
        %v429 = vsub.f32 %v365, %v397
        %v430 = vsub.f32 %v366, %v398
        %v431 = vsub.f32 %v367, %v399
        %v432 = vsub.f32 %v368, %v400
        %v433 = vsub.f32 %v369, %v401
        %v434 = vsub.f32 %v370, %v402
        %v435 = vsub.f32 %v371, %v403
        %v436 = vsub.f32 %v372, %v404
        %v437 = vsub.f32 %v373, %v405
        %v438 = vsub.f32 %v374, %v406
        %v439 = vsub.f32 %v375, %v407
        %v440 = vsub.f32 %v376, %v408
        %v441 = vsub.f32 %v377, %v409
        %v442 = vsub.f32 %v378, %v410
        %v443 = vsub.f32 %v379, %v411
        %v444 = vsub.f32 %v380, %v412
        %v445 = vsub.f32 %v381, %v413
        %v446 = vsub.f32 %v382, %v414
        %v447 = vsub.f32 %v383, %v415
        %v448 = vsub.f32 %v384, %v416
        %v449 = vmul.f32 %v417, %v417
        %v450 = vmul.f32 %v418, %v418
        %v451 = vmul.f32 %v419, %v419
        %v452 = vmul.f32 %v420, %v420
        %v453 = vmul.f32 %v421, %v421
        %v454 = vmul.f32 %v422, %v422
        %v455 = vmul.f32 %v423, %v423
        %v456 = vmul.f32 %v424, %v424
        %v457 = vmul.f32 %v425, %v425
        %v458 = vmul.f32 %v426, %v426
        %v459 = vmul.f32 %v427, %v427
        %v460 = vmul.f32 %v428, %v428
        %v461 = vmul.f32 %v429, %v429
        %v462 = vmul.f32 %v430, %v430
        %v463 = vmul.f32 %v431, %v431
        %v464 = vmul.f32 %v432, %v432
        %v465 = vmul.f32 %v433, %v433
        %v466 = vmul.f32 %v434, %v434
        %v467 = vmul.f32 %v435, %v435
        %v468 = vmul.f32 %v436, %v436
        %v469 = vmul.f32 %v437, %v437
        %v470 = vmul.f32 %v438, %v438
        %v471 = vmul.f32 %v439, %v439
        %v472 = vmul.f32 %v440, %v440
        %v473 = vmul.f32 %v441, %v441
        %v474 = vmul.f32 %v442, %v442
        %v475 = vmul.f32 %v443, %v443
        %v476 = vmul.f32 %v444, %v444
        %v477 = vmul.f32 %v445, %v445
        %v478 = vmul.f32 %v446, %v446
        %v479 = vmul.f32 %v447, %v447
        %v480 = vmul.f32 %v448, %v448
        %v481 = vld [vmem:[%s286] sm:$0xff]
        %v482 = vld [vmem:[%s286 + $0x8] sm:$0xff]
        %v483 = vld [vmem:[%s286 + $0x10] sm:$0xff]
        %v484 = vld [vmem:[%s286 + $0x18] sm:$0xff]
        %v485 = vld [vmem:[%s286 + $0x20] sm:$0xff]
        %v486 = vld [vmem:[%s286 + $0x28] sm:$0xff]
        %v487 = vld [vmem:[%s286 + $0x30] sm:$0xff]
        %v488 = vld [vmem:[%s286 + $0x38] sm:$0xff]
        %v489 = vld [vmem:[%s286 + $0x40] sm:$0xff]
        %v490 = vld [vmem:[%s286 + $0x48] sm:$0xff]
        %v491 = vld [vmem:[%s286 + $0x50] sm:$0xff]
        %v492 = vld [vmem:[%s286 + $0x58] sm:$0xff]
        %v493 = vld [vmem:[%s286 + $0x60] sm:$0xff]
        %v494 = vld [vmem:[%s286 + $0x68] sm:$0xff]
        %v495 = vld [vmem:[%s286 + $0x70] sm:$0xff]
        %v496 = vld [vmem:[%s286 + $0x78] sm:$0xff]
        %v497 = vld [vmem:[%s286 + $0x80] sm:$0xff]
        %v498 = vld [vmem:[%s286 + $0x88] sm:$0xff]
        %v499 = vld [vmem:[%s286 + $0x90] sm:$0xff]
        %v500 = vld [vmem:[%s286 + $0x98] sm:$0xff]
        %v501 = vld [vmem:[%s286 + $0xa0] sm:$0xff]
        %v502 = vld [vmem:[%s286 + $0xa8] sm:$0xff]
        %v503 = vld [vmem:[%s286 + $0xb0] sm:$0xff]
        %v504 = vld [vmem:[%s286 + $0xb8] sm:$0xff]
        %v505 = vld [vmem:[%s286 + $0xc0] sm:$0xff]
        %v506 = vld [vmem:[%s286 + $0xc8] sm:$0xff]
        %v507 = vld [vmem:[%s286 + $0xd0] sm:$0xff]
        %v508 = vld [vmem:[%s286 + $0xd8] sm:$0xff]
        %v509 = vld [vmem:[%s286 + $0xe0] sm:$0xff]
        %v510 = vld [vmem:[%s286 + $0xe8] sm:$0xff]
        %v511 = vld [vmem:[%s286 + $0xf0] sm:$0xff]
        %v512 = vld [vmem:[%s286 + $0xf8] sm:$0xff]
        %v513 = vld [vmem:[%s341] sm:$0xff]
        %v514 = vld [vmem:[%s341 + $0x8] sm:$0xff]
        %v515 = vld [vmem:[%s341 + $0x10] sm:$0xff]
        %v516 = vld [vmem:[%s341 + $0x18] sm:$0xff]
        %v517 = vld [vmem:[%s341 + $0x20] sm:$0xff]
        %v518 = vld [vmem:[%s341 + $0x28] sm:$0xff]
        %v519 = vld [vmem:[%s341 + $0x30] sm:$0xff]
        %v520 = vld [vmem:[%s341 + $0x38] sm:$0xff]
        %v521 = vld [vmem:[%s341 + $0x40] sm:$0xff]
        %v522 = vld [vmem:[%s341 + $0x48] sm:$0xff]
        %v523 = vld [vmem:[%s341 + $0x50] sm:$0xff]
        %v524 = vld [vmem:[%s341 + $0x58] sm:$0xff]
        %v525 = vld [vmem:[%s341 + $0x60] sm:$0xff]
        %v526 = vld [vmem:[%s341 + $0x68] sm:$0xff]
        %v527 = vld [vmem:[%s341 + $0x70] sm:$0xff]
        %v528 = vld [vmem:[%s341 + $0x78] sm:$0xff]
        %v529 = vld [vmem:[%s341 + $0x80] sm:$0xff]
        %v530 = vld [vmem:[%s341 + $0x88] sm:$0xff]
        %v531 = vld [vmem:[%s341 + $0x90] sm:$0xff]
        %v532 = vld [vmem:[%s341 + $0x98] sm:$0xff]
        %v533 = vld [vmem:[%s341 + $0xa0] sm:$0xff]
        %v534 = vld [vmem:[%s341 + $0xa8] sm:$0xff]
        %v535 = vld [vmem:[%s341 + $0xb0] sm:$0xff]
        %v536 = vld [vmem:[%s341 + $0xb8] sm:$0xff]
        %v537 = vld [vmem:[%s341 + $0xc0] sm:$0xff]
        %v538 = vld [vmem:[%s341 + $0xc8] sm:$0xff]
        %v539 = vld [vmem:[%s341 + $0xd0] sm:$0xff]
        %v540 = vld [vmem:[%s341 + $0xd8] sm:$0xff]
        %v541 = vld [vmem:[%s341 + $0xe0] sm:$0xff]
        %v542 = vld [vmem:[%s341 + $0xe8] sm:$0xff]
        %v543 = vld [vmem:[%s341 + $0xf0] sm:$0xff]
        %v544 = vld [vmem:[%s341 + $0xf8] sm:$0xff]
        %v545 = vadd.f32 %v449, 0.1
        %v546 = vadd.f32 %v450, 0.1
        %v547 = vadd.f32 %v451, 0.1
        %v548 = vadd.f32 %v452, 0.1
        %v549 = vadd.f32 %v453, 0.1
        %v550 = vadd.f32 %v454, 0.1
        %v551 = vadd.f32 %v455, 0.1
        %v552 = vadd.f32 %v456, 0.1
        %v553 = vadd.f32 %v457, 0.1
        %v554 = vadd.f32 %v458, 0.1
        %v555 = vadd.f32 %v459, 0.1
        %v556 = vadd.f32 %v460, 0.1
        %v557 = vadd.f32 %v461, 0.1
        %v558 = vadd.f32 %v462, 0.1
        %v559 = vadd.f32 %v463, 0.1
        %v560 = vadd.f32 %v464, 0.1
        %v561 = vadd.f32 %v465, 0.1
        %v562 = vadd.f32 %v466, 0.1
        %v563 = vadd.f32 %v467, 0.1
        %v564 = vadd.f32 %v468, 0.1
        %v565 = vadd.f32 %v469, 0.1
        %v566 = vadd.f32 %v470, 0.1
        %v567 = vadd.f32 %v471, 0.1
        %v568 = vadd.f32 %v472, 0.1
        %v569 = vadd.f32 %v473, 0.1
        %v570 = vadd.f32 %v474, 0.1
        %v571 = vadd.f32 %v475, 0.1
        %v572 = vadd.f32 %v476, 0.1
        %v573 = vadd.f32 %v477, 0.1
        %v574 = vadd.f32 %v478, 0.1
        %v575 = vadd.f32 %v479, 0.1
        %v576 = vadd.f32 %v480, 0.1
        %v577 = vrcp.pop %v545
        %v578 = vmul.f32 %v545, %v577
        %v579 = vsub.f32 1.0, %v578
        %v580 = vmul.f32 %v577, %v579
        %v581 = vadd.f32 %v577, %v580
        %vm582 = vweird.f32 %v545
        %vm583 = vweird.f32 %v577
        %vm584 = vmor %vm582, %vm583
        %v585 = vsel %vm584, %v577, %v581
        %v586 = vand.u32 2147483647, %v545
        %vm587 = vcmp.eq.f32.partialorder %v586, 8.507059e+37
        %v588 = vand.u32 %v545, 2147483648
        %v589 = vor.u32 1.1754944e-38, %v588
        %v590 = vsel %vm587, %v589, %v585
        %v591 = vrcp.pop %v546
        %v592 = vmul.f32 %v546, %v591
        %v593 = vsub.f32 1.0, %v592
        %v594 = vmul.f32 %v591, %v593
        %v595 = vadd.f32 %v591, %v594
        %vm596 = vweird.f32 %v546
        %vm597 = vweird.f32 %v591
        %vm598 = vmor %vm596, %vm597
        %v599 = vsel %vm598, %v591, %v595
        %v600 = vand.u32 2147483647, %v546
        %vm601 = vcmp.eq.f32.partialorder %v600, 8.507059e+37
        %v602 = vand.u32 %v546, 2147483648
        %v603 = vor.u32 1.1754944e-38, %v602
        %v604 = vsel %vm601, %v603, %v599
        %v605 = vrcp.pop %v547
        %v606 = vmul.f32 %v547, %v605
        %v607 = vsub.f32 1.0, %v606
        %v608 = vmul.f32 %v605, %v607
        %v609 = vadd.f32 %v605, %v608
        %vm610 = vweird.f32 %v547
        %vm611 = vweird.f32 %v605
        %vm612 = vmor %vm610, %vm611
        %v613 = vsel %vm612, %v605, %v609
        %v614 = vand.u32 2147483647, %v547
        %vm615 = vcmp.eq.f32.partialorder %v614, 8.507059e+37
        %v616 = vand.u32 %v547, 2147483648
        %v617 = vor.u32 1.1754944e-38, %v616
        %v618 = vsel %vm615, %v617, %v613
        %v619 = vrcp.pop %v548
        %v620 = vmul.f32 %v548, %v619
        %v621 = vsub.f32 1.0, %v620
        %v622 = vmul.f32 %v619, %v621
        %v623 = vadd.f32 %v619, %v622
        %vm624 = vweird.f32 %v548
        %vm625 = vweird.f32 %v619
        %vm626 = vmor %vm624, %vm625
        %v627 = vsel %vm626, %v619, %v623
        %v628 = vand.u32 2147483647, %v548
        %vm629 = vcmp.eq.f32.partialorder %v628, 8.507059e+37
        %v630 = vand.u32 %v548, 2147483648
        %v631 = vor.u32 1.1754944e-38, %v630
        %v632 = vsel %vm629, %v631, %v627
        %v633 = vrcp.pop %v549
        %v634 = vmul.f32 %v549, %v633
        %v635 = vsub.f32 1.0, %v634
        %v636 = vmul.f32 %v633, %v635
        %v637 = vadd.f32 %v633, %v636
        %vm638 = vweird.f32 %v549
        %vm639 = vweird.f32 %v633
        %vm640 = vmor %vm638, %vm639
        %v641 = vsel %vm640, %v633, %v637
        %v642 = vand.u32 2147483647, %v549
        %vm643 = vcmp.eq.f32.partialorder %v642, 8.507059e+37
        %v644 = vand.u32 %v549, 2147483648
        %v645 = vor.u32 1.1754944e-38, %v644
        %v646 = vsel %vm643, %v645, %v641
        %v647 = vrcp.pop %v550
        %v648 = vmul.f32 %v550, %v647
        %v649 = vsub.f32 1.0, %v648
        %v650 = vmul.f32 %v647, %v649
        %v651 = vadd.f32 %v647, %v650
        %vm652 = vweird.f32 %v550
        %vm653 = vweird.f32 %v647
        %vm654 = vmor %vm652, %vm653
        %v655 = vsel %vm654, %v647, %v651
        %v656 = vand.u32 2147483647, %v550
        %vm657 = vcmp.eq.f32.partialorder %v656, 8.507059e+37
        %v658 = vand.u32 %v550, 2147483648
        %v659 = vor.u32 1.1754944e-38, %v658
        %v660 = vsel %vm657, %v659, %v655
        %v661 = vrcp.pop %v551
        %v662 = vmul.f32 %v551, %v661
        %v663 = vsub.f32 1.0, %v662
        %v664 = vmul.f32 %v661, %v663
        %v665 = vadd.f32 %v661, %v664
        %vm666 = vweird.f32 %v551
        %vm667 = vweird.f32 %v661
        %vm668 = vmor %vm666, %vm667
        %v669 = vsel %vm668, %v661, %v665
        %v670 = vand.u32 2147483647, %v551
        %vm671 = vcmp.eq.f32.partialorder %v670, 8.507059e+37
        %v672 = vand.u32 %v551, 2147483648
        %v673 = vor.u32 1.1754944e-38, %v672
        %v674 = vsel %vm671, %v673, %v669
        %v675 = vrcp.pop %v552
        %v676 = vmul.f32 %v552, %v675
        %v677 = vsub.f32 1.0, %v676
        %v678 = vmul.f32 %v675, %v677
        %v679 = vadd.f32 %v675, %v678
        %vm680 = vweird.f32 %v552
        %vm681 = vweird.f32 %v675
        %vm682 = vmor %vm680, %vm681
        %v683 = vsel %vm682, %v675, %v679
        %v684 = vand.u32 2147483647, %v552
        %vm685 = vcmp.eq.f32.partialorder %v684, 8.507059e+37
        %v686 = vand.u32 %v552, 2147483648
        %v687 = vor.u32 1.1754944e-38, %v686
        %v688 = vsel %vm685, %v687, %v683
        %v689 = vrcp.pop %v553
        %v690 = vmul.f32 %v553, %v689
        %v691 = vsub.f32 1.0, %v690
        %v692 = vmul.f32 %v689, %v691
        %v693 = vadd.f32 %v689, %v692
        %vm694 = vweird.f32 %v553
        %vm695 = vweird.f32 %v689
        %vm696 = vmor %vm694, %vm695
        %v697 = vsel %vm696, %v689, %v693
        %v698 = vand.u32 2147483647, %v553
        %vm699 = vcmp.eq.f32.partialorder %v698, 8.507059e+37
        %v700 = vand.u32 %v553, 2147483648
        %v701 = vor.u32 1.1754944e-38, %v700
        %v702 = vsel %vm699, %v701, %v697
        %v703 = vrcp.pop %v554
        %v704 = vmul.f32 %v554, %v703
        %v705 = vsub.f32 1.0, %v704
        %v706 = vmul.f32 %v703, %v705
        %v707 = vadd.f32 %v703, %v706
        %vm708 = vweird.f32 %v554
        %vm709 = vweird.f32 %v703
        %vm710 = vmor %vm708, %vm709
        %v711 = vsel %vm710, %v703, %v707
        %v712 = vand.u32 2147483647, %v554
        %vm713 = vcmp.eq.f32.partialorder %v712, 8.507059e+37
        %v714 = vand.u32 %v554, 2147483648
        %v715 = vor.u32 1.1754944e-38, %v714
        %v716 = vsel %vm713, %v715, %v711
        %v717 = vrcp.pop %v555
        %v718 = vmul.f32 %v555, %v717
        %v719 = vsub.f32 1.0, %v718
        %v720 = vmul.f32 %v717, %v719
        %v721 = vadd.f32 %v717, %v720
        %vm722 = vweird.f32 %v555
        %vm723 = vweird.f32 %v717
        %vm724 = vmor %vm722, %vm723
        %v725 = vsel %vm724, %v717, %v721
        %v726 = vand.u32 2147483647, %v555
        %vm727 = vcmp.eq.f32.partialorder %v726, 8.507059e+37
        %v728 = vand.u32 %v555, 2147483648
        %v729 = vor.u32 1.1754944e-38, %v728
        %v730 = vsel %vm727, %v729, %v725
        %v731 = vrcp.pop %v556
        %v732 = vmul.f32 %v556, %v731
        %v733 = vsub.f32 1.0, %v732
        %v734 = vmul.f32 %v731, %v733
        %v735 = vadd.f32 %v731, %v734
        %vm736 = vweird.f32 %v556
        %vm737 = vweird.f32 %v731
        %vm738 = vmor %vm736, %vm737
        %v739 = vsel %vm738, %v731, %v735
        %v740 = vand.u32 2147483647, %v556
        %vm741 = vcmp.eq.f32.partialorder %v740, 8.507059e+37
        %v742 = vand.u32 %v556, 2147483648
        %v743 = vor.u32 1.1754944e-38, %v742
        %v744 = vsel %vm741, %v743, %v739
        %v745 = vrcp.pop %v557
        %v746 = vmul.f32 %v557, %v745
        %v747 = vsub.f32 1.0, %v746
        %v748 = vmul.f32 %v745, %v747
        %v749 = vadd.f32 %v745, %v748
        %vm750 = vweird.f32 %v557
        %vm751 = vweird.f32 %v745
        %vm752 = vmor %vm750, %vm751
        %v753 = vsel %vm752, %v745, %v749
        %v754 = vand.u32 2147483647, %v557
        %vm755 = vcmp.eq.f32.partialorder %v754, 8.507059e+37
        %v756 = vand.u32 %v557, 2147483648
        %v757 = vor.u32 1.1754944e-38, %v756
        %v758 = vsel %vm755, %v757, %v753
        %v759 = vrcp.pop %v558
        %v760 = vmul.f32 %v558, %v759
        %v761 = vsub.f32 1.0, %v760
        %v762 = vmul.f32 %v759, %v761
        %v763 = vadd.f32 %v759, %v762
        %vm764 = vweird.f32 %v558
        %vm765 = vweird.f32 %v759
        %vm766 = vmor %vm764, %vm765
        %v767 = vsel %vm766, %v759, %v763
        %v768 = vand.u32 2147483647, %v558
        %vm769 = vcmp.eq.f32.partialorder %v768, 8.507059e+37
        %v770 = vand.u32 %v558, 2147483648
        %v771 = vor.u32 1.1754944e-38, %v770
        %v772 = vsel %vm769, %v771, %v767
        %v773 = vrcp.pop %v559
        %v774 = vmul.f32 %v559, %v773
        %v775 = vsub.f32 1.0, %v774
        %v776 = vmul.f32 %v773, %v775
        %v777 = vadd.f32 %v773, %v776
        %vm778 = vweird.f32 %v559
        %vm779 = vweird.f32 %v773
        %vm780 = vmor %vm778, %vm779
        %v781 = vsel %vm780, %v773, %v777
        %v782 = vand.u32 2147483647, %v559
        %vm783 = vcmp.eq.f32.partialorder %v782, 8.507059e+37
        %v784 = vand.u32 %v559, 2147483648
        %v785 = vor.u32 1.1754944e-38, %v784
        %v786 = vsel %vm783, %v785, %v781
        %v787 = vrcp.pop %v560
        %v788 = vmul.f32 %v560, %v787
        %v789 = vsub.f32 1.0, %v788
        %v790 = vmul.f32 %v787, %v789
        %v791 = vadd.f32 %v787, %v790
        %vm792 = vweird.f32 %v560
        %vm793 = vweird.f32 %v787
        %vm794 = vmor %vm792, %vm793
        %v795 = vsel %vm794, %v787, %v791
        %v796 = vand.u32 2147483647, %v560
        %vm797 = vcmp.eq.f32.partialorder %v796, 8.507059e+37
        %v798 = vand.u32 %v560, 2147483648
        %v799 = vor.u32 1.1754944e-38, %v798
        %v800 = vsel %vm797, %v799, %v795
        %v801 = vrcp.pop %v561
        %v802 = vmul.f32 %v561, %v801
        %v803 = vsub.f32 1.0, %v802
        %v804 = vmul.f32 %v801, %v803
        %v805 = vadd.f32 %v801, %v804
        %vm806 = vweird.f32 %v561
        %vm807 = vweird.f32 %v801
        %vm808 = vmor %vm806, %vm807
        %v809 = vsel %vm808, %v801, %v805
        %v810 = vand.u32 2147483647, %v561
        %vm811 = vcmp.eq.f32.partialorder %v810, 8.507059e+37
        %v812 = vand.u32 %v561, 2147483648
        %v813 = vor.u32 1.1754944e-38, %v812
        %v814 = vsel %vm811, %v813, %v809
        %v815 = vrcp.pop %v562
        %v816 = vmul.f32 %v562, %v815
        %v817 = vsub.f32 1.0, %v816
        %v818 = vmul.f32 %v815, %v817
        %v819 = vadd.f32 %v815, %v818
        %vm820 = vweird.f32 %v562
        %vm821 = vweird.f32 %v815
        %vm822 = vmor %vm820, %vm821
        %v823 = vsel %vm822, %v815, %v819
        %v824 = vand.u32 2147483647, %v562
        %vm825 = vcmp.eq.f32.partialorder %v824, 8.507059e+37
        %v826 = vand.u32 %v562, 2147483648
        %v827 = vor.u32 1.1754944e-38, %v826
        %v828 = vsel %vm825, %v827, %v823
        %v829 = vrcp.pop %v563
        %v830 = vmul.f32 %v563, %v829
        %v831 = vsub.f32 1.0, %v830
        %v832 = vmul.f32 %v829, %v831
        %v833 = vadd.f32 %v829, %v832
        %vm834 = vweird.f32 %v563
        %vm835 = vweird.f32 %v829
        %vm836 = vmor %vm834, %vm835
        %v837 = vsel %vm836, %v829, %v833
        %v838 = vand.u32 2147483647, %v563
        %vm839 = vcmp.eq.f32.partialorder %v838, 8.507059e+37
        %v840 = vand.u32 %v563, 2147483648
        %v841 = vor.u32 1.1754944e-38, %v840
        %v842 = vsel %vm839, %v841, %v837
        %v843 = vrcp.pop %v564
        %v844 = vmul.f32 %v564, %v843
        %v845 = vsub.f32 1.0, %v844
        %v846 = vmul.f32 %v843, %v845
        %v847 = vadd.f32 %v843, %v846
        %vm848 = vweird.f32 %v564
        %vm849 = vweird.f32 %v843
        %vm850 = vmor %vm848, %vm849
        %v851 = vsel %vm850, %v843, %v847
        %v852 = vand.u32 2147483647, %v564
        %vm853 = vcmp.eq.f32.partialorder %v852, 8.507059e+37
        %v854 = vand.u32 %v564, 2147483648
        %v855 = vor.u32 1.1754944e-38, %v854
        %v856 = vsel %vm853, %v855, %v851
        %v857 = vrcp.pop %v565
        %v858 = vmul.f32 %v565, %v857
        %v859 = vsub.f32 1.0, %v858
        %v860 = vmul.f32 %v857, %v859
        %v861 = vadd.f32 %v857, %v860
        %vm862 = vweird.f32 %v565
        %vm863 = vweird.f32 %v857
        %vm864 = vmor %vm862, %vm863
        %v865 = vsel %vm864, %v857, %v861
        %v866 = vand.u32 2147483647, %v565
        %vm867 = vcmp.eq.f32.partialorder %v866, 8.507059e+37
        %v868 = vand.u32 %v565, 2147483648
        %v869 = vor.u32 1.1754944e-38, %v868
        %v870 = vsel %vm867, %v869, %v865
        %v871 = vrcp.pop %v566
        %v872 = vmul.f32 %v566, %v871
        %v873 = vsub.f32 1.0, %v872
        %v874 = vmul.f32 %v871, %v873
        %v875 = vadd.f32 %v871, %v874
        %vm876 = vweird.f32 %v566
        %vm877 = vweird.f32 %v871
        %vm878 = vmor %vm876, %vm877
        %v879 = vsel %vm878, %v871, %v875
        %v880 = vand.u32 2147483647, %v566
        %vm881 = vcmp.eq.f32.partialorder %v880, 8.507059e+37
        %v882 = vand.u32 %v566, 2147483648
        %v883 = vor.u32 1.1754944e-38, %v882
        %v884 = vsel %vm881, %v883, %v879
        %v885 = vrcp.pop %v567
        %v886 = vmul.f32 %v567, %v885
        %v887 = vsub.f32 1.0, %v886
        %v888 = vmul.f32 %v885, %v887
        %v889 = vadd.f32 %v885, %v888
        %vm890 = vweird.f32 %v567
        %vm891 = vweird.f32 %v885
        %vm892 = vmor %vm890, %vm891
        %v893 = vsel %vm892, %v885, %v889
        %v894 = vand.u32 2147483647, %v567
        %vm895 = vcmp.eq.f32.partialorder %v894, 8.507059e+37
        %v896 = vand.u32 %v567, 2147483648
        %v897 = vor.u32 1.1754944e-38, %v896
        %v898 = vsel %vm895, %v897, %v893
        %v899 = vrcp.pop %v568
        %v900 = vmul.f32 %v568, %v899
        %v901 = vsub.f32 1.0, %v900
        %v902 = vmul.f32 %v899, %v901
        %v903 = vadd.f32 %v899, %v902
        %vm904 = vweird.f32 %v568
        %vm905 = vweird.f32 %v899
        %vm906 = vmor %vm904, %vm905
        %v907 = vsel %vm906, %v899, %v903
        %v908 = vand.u32 2147483647, %v568
        %vm909 = vcmp.eq.f32.partialorder %v908, 8.507059e+37
        %v910 = vand.u32 %v568, 2147483648
        %v911 = vor.u32 1.1754944e-38, %v910
        %v912 = vsel %vm909, %v911, %v907
        %v913 = vrcp.pop %v569
        %v914 = vmul.f32 %v569, %v913
        %v915 = vsub.f32 1.0, %v914
        %v916 = vmul.f32 %v913, %v915
        %v917 = vadd.f32 %v913, %v916
        %vm918 = vweird.f32 %v569
        %vm919 = vweird.f32 %v913
        %vm920 = vmor %vm918, %vm919
        %v921 = vsel %vm920, %v913, %v917
        %v922 = vand.u32 2147483647, %v569
        %vm923 = vcmp.eq.f32.partialorder %v922, 8.507059e+37
        %v924 = vand.u32 %v569, 2147483648
        %v925 = vor.u32 1.1754944e-38, %v924
        %v926 = vsel %vm923, %v925, %v921
        %v927 = vrcp.pop %v570
        %v928 = vmul.f32 %v570, %v927
        %v929 = vsub.f32 1.0, %v928
        %v930 = vmul.f32 %v927, %v929
        %v931 = vadd.f32 %v927, %v930
        %vm932 = vweird.f32 %v570
        %vm933 = vweird.f32 %v927
        %vm934 = vmor %vm932, %vm933
        %v935 = vsel %vm934, %v927, %v931
        %v936 = vand.u32 2147483647, %v570
        %vm937 = vcmp.eq.f32.partialorder %v936, 8.507059e+37
        %v938 = vand.u32 %v570, 2147483648
        %v939 = vor.u32 1.1754944e-38, %v938
        %v940 = vsel %vm937, %v939, %v935
        %v941 = vrcp.pop %v571
        %v942 = vmul.f32 %v571, %v941
        %v943 = vsub.f32 1.0, %v942
        %v944 = vmul.f32 %v941, %v943
        %v945 = vadd.f32 %v941, %v944
        %vm946 = vweird.f32 %v571
        %vm947 = vweird.f32 %v941
        %vm948 = vmor %vm946, %vm947
        %v949 = vsel %vm948, %v941, %v945
        %v950 = vand.u32 2147483647, %v571
        %vm951 = vcmp.eq.f32.partialorder %v950, 8.507059e+37
        %v952 = vand.u32 %v571, 2147483648
        %v953 = vor.u32 1.1754944e-38, %v952
        %v954 = vsel %vm951, %v953, %v949
        %v955 = vrcp.pop %v572
        %v956 = vmul.f32 %v572, %v955
        %v957 = vsub.f32 1.0, %v956
        %v958 = vmul.f32 %v955, %v957
        %v959 = vadd.f32 %v955, %v958
        %vm960 = vweird.f32 %v572
        %vm961 = vweird.f32 %v955
        %vm962 = vmor %vm960, %vm961
        %v963 = vsel %vm962, %v955, %v959
        %v964 = vand.u32 2147483647, %v572
        %vm965 = vcmp.eq.f32.partialorder %v964, 8.507059e+37
        %v966 = vand.u32 %v572, 2147483648
        %v967 = vor.u32 1.1754944e-38, %v966
        %v968 = vsel %vm965, %v967, %v963
        %v969 = vrcp.pop %v573
        %v970 = vmul.f32 %v573, %v969
        %v971 = vsub.f32 1.0, %v970
        %v972 = vmul.f32 %v969, %v971
        %v973 = vadd.f32 %v969, %v972
        %vm974 = vweird.f32 %v573
        %vm975 = vweird.f32 %v969
        %vm976 = vmor %vm974, %vm975
        %v977 = vsel %vm976, %v969, %v973
        %v978 = vand.u32 2147483647, %v573
        %vm979 = vcmp.eq.f32.partialorder %v978, 8.507059e+37
        %v980 = vand.u32 %v573, 2147483648
        %v981 = vor.u32 1.1754944e-38, %v980
        %v982 = vsel %vm979, %v981, %v977
        %v983 = vrcp.pop %v574
        %v984 = vmul.f32 %v574, %v983
        %v985 = vsub.f32 1.0, %v984
        %v986 = vmul.f32 %v983, %v985
        %v987 = vadd.f32 %v983, %v986
        %vm988 = vweird.f32 %v574
        %vm989 = vweird.f32 %v983
        %vm990 = vmor %vm988, %vm989
        %v991 = vsel %vm990, %v983, %v987
        %v992 = vand.u32 2147483647, %v574
        %vm993 = vcmp.eq.f32.partialorder %v992, 8.507059e+37
        %v994 = vand.u32 %v574, 2147483648
        %v995 = vor.u32 1.1754944e-38, %v994
        %v996 = vsel %vm993, %v995, %v991
        %v997 = vrcp.pop %v575
        %v998 = vmul.f32 %v575, %v997
        %v999 = vsub.f32 1.0, %v998
        %v1000 = vmul.f32 %v997, %v999
        %v1001 = vadd.f32 %v997, %v1000
        %vm1002 = vweird.f32 %v575
        %vm1003 = vweird.f32 %v997
        %vm1004 = vmor %vm1002, %vm1003
        %v1005 = vsel %vm1004, %v997, %v1001
        %v1006 = vand.u32 2147483647, %v575
        %vm1007 = vcmp.eq.f32.partialorder %v1006, 8.507059e+37
        %v1008 = vand.u32 %v575, 2147483648
        %v1009 = vor.u32 1.1754944e-38, %v1008
        %v1010 = vsel %vm1007, %v1009, %v1005
        %v1011 = vrcp.pop %v576
        %v1012 = vmul.f32 %v576, %v1011
        %v1013 = vsub.f32 1.0, %v1012
        %v1014 = vmul.f32 %v1011, %v1013
        %v1015 = vadd.f32 %v1011, %v1014
        %vm1016 = vweird.f32 %v576
        %vm1017 = vweird.f32 %v1011
        %vm1018 = vmor %vm1016, %vm1017
        %v1019 = vsel %vm1018, %v1011, %v1015
        %v1020 = vand.u32 2147483647, %v576
        %vm1021 = vcmp.eq.f32.partialorder %v1020, 8.507059e+37
        %v1022 = vand.u32 %v576, 2147483648
        %v1023 = vor.u32 1.1754944e-38, %v1022
        %v1024 = vsel %vm1021, %v1023, %v1019
        %v1025 = vmul.f32 %v513, %v590
        %v1026 = vmul.f32 %v514, %v604
        %v1027 = vmul.f32 %v515, %v618
        %v1028 = vmul.f32 %v516, %v632
        %v1029 = vmul.f32 %v517, %v646
        %v1030 = vmul.f32 %v518, %v660
        %v1031 = vmul.f32 %v519, %v674
        %v1032 = vmul.f32 %v520, %v688
        %v1033 = vmul.f32 %v521, %v702
        %v1034 = vmul.f32 %v522, %v716
        %v1035 = vmul.f32 %v523, %v730
        %v1036 = vmul.f32 %v524, %v744
        %v1037 = vmul.f32 %v525, %v758
        %v1038 = vmul.f32 %v526, %v772
        %v1039 = vmul.f32 %v527, %v786
        %v1040 = vmul.f32 %v528, %v800
        %v1041 = vmul.f32 %v529, %v814
        %v1042 = vmul.f32 %v530, %v828
        %v1043 = vmul.f32 %v531, %v842
        %v1044 = vmul.f32 %v532, %v856
        %v1045 = vmul.f32 %v533, %v870
        %v1046 = vmul.f32 %v534, %v884
        %v1047 = vmul.f32 %v535, %v898
        %v1048 = vmul.f32 %v536, %v912
        %v1049 = vmul.f32 %v537, %v926
        %v1050 = vmul.f32 %v538, %v940
        %v1051 = vmul.f32 %v539, %v954
        %v1052 = vmul.f32 %v540, %v968
        %v1053 = vmul.f32 %v541, %v982
        %v1054 = vmul.f32 %v542, %v996
        %v1055 = vmul.f32 %v543, %v1010
        %v1056 = vmul.f32 %v544, %v1024
        %v1057 = vadd.f32 %v481, %v1025
        %v1058 = vadd.f32 %v482, %v1026
        %v1059 = vadd.f32 %v483, %v1027
        %v1060 = vadd.f32 %v484, %v1028
        %v1061 = vadd.f32 %v485, %v1029
        %v1062 = vadd.f32 %v486, %v1030
        %v1063 = vadd.f32 %v487, %v1031
        %v1064 = vadd.f32 %v488, %v1032
        %v1065 = vadd.f32 %v489, %v1033
        %v1066 = vadd.f32 %v490, %v1034
        %v1067 = vadd.f32 %v491, %v1035
        %v1068 = vadd.f32 %v492, %v1036
        %v1069 = vadd.f32 %v493, %v1037
        %v1070 = vadd.f32 %v494, %v1038
        %v1071 = vadd.f32 %v495, %v1039
        %v1072 = vadd.f32 %v496, %v1040
        %v1073 = vadd.f32 %v497, %v1041
        %v1074 = vadd.f32 %v498, %v1042
        %v1075 = vadd.f32 %v499, %v1043
        %v1076 = vadd.f32 %v500, %v1044
        %v1077 = vadd.f32 %v501, %v1045
        %v1078 = vadd.f32 %v502, %v1046
        %v1079 = vadd.f32 %v503, %v1047
        %v1080 = vadd.f32 %v504, %v1048
        %v1081 = vadd.f32 %v505, %v1049
        %v1082 = vadd.f32 %v506, %v1050
        %v1083 = vadd.f32 %v507, %v1051
        %v1084 = vadd.f32 %v508, %v1052
        %v1085 = vadd.f32 %v509, %v1053
        %v1086 = vadd.f32 %v510, %v1054
        %v1087 = vadd.f32 %v511, %v1055
        %v1088 = vadd.f32 %v512, %v1056
        %1089 = vst [vmem:[%s328] sm:$0xff] %v1057
        %1090 = vst [vmem:[%s328 + $0x8] sm:$0xff] %v1058
        %1091 = vst [vmem:[%s328 + $0x10] sm:$0xff] %v1059
        %1092 = vst [vmem:[%s328 + $0x18] sm:$0xff] %v1060
        %1093 = vst [vmem:[%s328 + $0x20] sm:$0xff] %v1061
        %1094 = vst [vmem:[%s328 + $0x28] sm:$0xff] %v1062
        %1095 = vst [vmem:[%s328 + $0x30] sm:$0xff] %v1063
        %1096 = vst [vmem:[%s328 + $0x38] sm:$0xff] %v1064
        %1097 = vst [vmem:[%s328 + $0x40] sm:$0xff] %v1065
        %1098 = vst [vmem:[%s328 + $0x48] sm:$0xff] %v1066
        %1099 = vst [vmem:[%s328 + $0x50] sm:$0xff] %v1067
        %1100 = vst [vmem:[%s328 + $0x58] sm:$0xff] %v1068
        %1101 = vst [vmem:[%s328 + $0x60] sm:$0xff] %v1069
        %1102 = vst [vmem:[%s328 + $0x68] sm:$0xff] %v1070
        %1103 = vst [vmem:[%s328 + $0x70] sm:$0xff] %v1071
        %1104 = vst [vmem:[%s328 + $0x78] sm:$0xff] %v1072
        %1105 = vst [vmem:[%s328 + $0x80] sm:$0xff] %v1073
        %1106 = vst [vmem:[%s328 + $0x88] sm:$0xff] %v1074
        %1107 = vst [vmem:[%s328 + $0x90] sm:$0xff] %v1075
        %1108 = vst [vmem:[%s328 + $0x98] sm:$0xff] %v1076
        %1109 = vst [vmem:[%s328 + $0xa0] sm:$0xff] %v1077
        %1110 = vst [vmem:[%s328 + $0xa8] sm:$0xff] %v1078
        %1111 = vst [vmem:[%s328 + $0xb0] sm:$0xff] %v1079
        %1112 = vst [vmem:[%s328 + $0xb8] sm:$0xff] %v1080
        %1113 = vst [vmem:[%s328 + $0xc0] sm:$0xff] %v1081
        %1114 = vst [vmem:[%s328 + $0xc8] sm:$0xff] %v1082
        %1115 = vst [vmem:[%s328 + $0xd0] sm:$0xff] %v1083
        %1116 = vst [vmem:[%s328 + $0xd8] sm:$0xff] %v1084
        %1117 = vst [vmem:[%s328 + $0xe0] sm:$0xff] %v1085
        %1118 = vst [vmem:[%s328 + $0xe8] sm:$0xff] %v1086
        %1119 = vst [vmem:[%s328 + $0xf0] sm:$0xff] %v1087
        %1120 = vst [vmem:[%s328 + $0xf8] sm:$0xff] %v1088
        %v1121 = vmul.f32 %v1057, %v449
        %v1122 = vmul.f32 %v1058, %v450
        %v1123 = vmul.f32 %v1059, %v451
        %v1124 = vmul.f32 %v1060, %v452
        %v1125 = vmul.f32 %v1061, %v453
        %v1126 = vmul.f32 %v1062, %v454
        %v1127 = vmul.f32 %v1063, %v455
        %v1128 = vmul.f32 %v1064, %v456
        %v1129 = vmul.f32 %v1065, %v457
        %v1130 = vmul.f32 %v1066, %v458
        %v1131 = vmul.f32 %v1067, %v459
        %v1132 = vmul.f32 %v1068, %v460
        %v1133 = vmul.f32 %v1069, %v461
        %v1134 = vmul.f32 %v1070, %v462
        %v1135 = vmul.f32 %v1071, %v463
        %v1136 = vmul.f32 %v1072, %v464
        %v1137 = vmul.f32 %v1073, %v465
        %v1138 = vmul.f32 %v1074, %v466
        %v1139 = vmul.f32 %v1075, %v467
        %v1140 = vmul.f32 %v1076, %v468
        %v1141 = vmul.f32 %v1077, %v469
        %v1142 = vmul.f32 %v1078, %v470
        %v1143 = vmul.f32 %v1079, %v471
        %v1144 = vmul.f32 %v1080, %v472
        %v1145 = vmul.f32 %v1081, %v473
        %v1146 = vmul.f32 %v1082, %v474
        %v1147 = vmul.f32 %v1083, %v475
        %v1148 = vmul.f32 %v1084, %v476
        %v1149 = vmul.f32 %v1085, %v477
        %v1150 = vmul.f32 %v1086, %v478
        %v1151 = vmul.f32 %v1087, %v479
        %v1152 = vmul.f32 %v1088, %v480
        %v1153 = vadd.f32 %v1121, %v1125
        %v1154 = vadd.f32 %v1153, %v1129
        %v1155 = vadd.f32 %v1154, %v1133
        %v1156 = vadd.f32 %v1155, %v1137
        %v1157 = vadd.f32 %v1156, %v1141
        %v1158 = vadd.f32 %v1157, %v1145
        %v1159 = vadd.f32 %v1158, %v1149
        %v1160 = vadd.f32 %v1122, %v1126
        %v1161 = vadd.f32 %v1160, %v1130
        %v1162 = vadd.f32 %v1161, %v1134
        %v1163 = vadd.f32 %v1162, %v1138
        %v1164 = vadd.f32 %v1163, %v1142
        %v1165 = vadd.f32 %v1164, %v1146
        %v1166 = vadd.f32 %v1165, %v1150
        %v1167 = vadd.f32 %v1123, %v1127
        %v1168 = vadd.f32 %v1167, %v1131
        %v1169 = vadd.f32 %v1168, %v1135
        %v1170 = vadd.f32 %v1169, %v1139
        %v1171 = vadd.f32 %v1170, %v1143
        %v1172 = vadd.f32 %v1171, %v1147
        %v1173 = vadd.f32 %v1172, %v1151
        %v1174 = vadd.f32 %v1124, %v1128
        %v1175 = vadd.f32 %v1174, %v1132
        %v1176 = vadd.f32 %v1175, %v1136
        %v1177 = vadd.f32 %v1176, %v1140
        %v1178 = vadd.f32 %v1177, %v1144
        %v1179 = vadd.f32 %v1178, %v1148
        %v1180 = vadd.f32 %v1179, %v1152
        %1181 = vst [vmem:[%s335] sm:$0xff] %v1159
        %1182 = vst [vmem:[%s335 + $0x8] sm:$0xff] %v1166
        %1183 = vst [vmem:[%s335 + $0x10] sm:$0xff] %v1173
        %1184 = vst [vmem:[%s335 + $0x18] sm:$0xff] %v1180
        %s1185 = sand.u32 %s141, 1
        %s1186 = scalar_lea.sflag [#allocation4], %s1185
        %s1187 = sand.u32 %s141, 1
        %s1188 = smul.addr %s1187, 256
        %s1189 = scalar_lea.vmem [#allocation7], %s1188
        %s1190 = sand.u32 %s167, 1
        %s1191 = scalar_lea.sflag [#allocation9], %s1190
        %s1192 = sand.u32 %s167, 1
        %s1193 = smul.addr %s1192, 32
        %s1194 = scalar_lea.vmem [#allocation8], %s1193
        // Predicated region
        $region45: #{tpu_custom_call.1} parent=35 // pred_check
          %p1195 = pneg %p151
        $region46: #{tpu_custom_call.1} parent=35 // pred_check_branch
          %1197 = sbr.rel (%p1195) target = $region48
        $region47: #{tpu_custom_call.1} parent=35 // pred_region
          %s1198 = smul.u32 8, %s29
          %1200 = vsyncadd %s1186, 0
          %s1201 = smul.addr %s1198, 4
          %s1202 = smul.addr %s1201, 8
          %s1203 = scalar_lea.hbm %s4, %s1202
          %s1204 = sshll.u32 %s1189, 4
          %s1205 = int_to_ptr.vmem [resolvable:$true] %s1204
          %s1206 = sshll.u32 %s1203, 4
          %s1207 = int_to_ptr.hbm [resolvable:$true] %s1206
          %1212 = dma.vmem_to_hbm [thread:$0]  %s1205, 4096, %s1207, %s1186, 512, 512, 32
        $region48: #{tpu_custom_call.1} parent=35 // pred_fallthru
          _
        // Predicated region
        $region49: #{tpu_custom_call.1} parent=35 // pred_check
          %p1213 = pneg %p177
        $region50: #{tpu_custom_call.1} parent=35 // pred_check_branch
          %1215 = sbr.rel (%p1213) target = $region52
        $region51: #{tpu_custom_call.1} parent=35 // pred_region
          %1217 = vsyncadd %s1191, 0
          %s1218 = smul.addr %s29, 4
          %s1219 = smul.addr %s1218, 8
          %s1220 = scalar_lea.hbm %s5, %s1219
          %s1222 = sshll.u32 %s1194, 4
          %s1223 = int_to_ptr.vmem [resolvable:$true] %s1222
          %s1224 = sshll.u32 %s1220, 4
          %s1225 = int_to_ptr.hbm [resolvable:$true] %s1224
          %1227 = dma.vmem_to_hbm [thread:$0]  %s1223, 512, %s1225, %s1191
        $region52: #{tpu_custom_call.1} parent=35 // pred_fallthru
          _
      $region36: #{tpu_custom_call.1} parent=5 // pred_fallthru
        _
      %p1228 = scmp.le.s32.totalorder 2, %s24
      // Predicated region
      $region53: #{tpu_custom_call.1} parent=5 // pred_check
        %p1229 = pneg %p1228
      $region54: #{tpu_custom_call.1} parent=5 // pred_check_branch
        %1231 = sbr.rel (%p1229) target = $region56
      $region55: #{tpu_custom_call.1} parent=5 // pred_region
        %s1232 = ssub.s32 %s24, 2
        // Predicated region
        $region57: #{tpu_custom_call.1} parent=55 // pred_check
          %p1233 = pneg %p157
        $region58: #{tpu_custom_call.1} parent=55 // pred_check_branch
          %1235 = sbr.rel (%p1233) target = $region60
        $region59: #{tpu_custom_call.1} parent=55 // pred_region
          %s1236 = sand.u32 %s142, 1
          %s1237 = scalar_lea.sflag [#allocation4], %s1236
          %s1238 = sand.u32 %s142, 1
          %s1239 = smul.addr %s1238, 256
          %s1240 = scalar_lea.vmem [#allocation7], %s1239
          %1242 = dma.done %s1237, 4096
        $region60: #{tpu_custom_call.1} parent=55 // pred_fallthru
          _
        // Predicated region
        $region61: #{tpu_custom_call.1} parent=55 // pred_check
          %p1243 = pneg %p183
        $region62: #{tpu_custom_call.1} parent=55 // pred_check_branch
          %1245 = sbr.rel (%p1243) target = $region64
        $region63: #{tpu_custom_call.1} parent=55 // pred_region
          %s1246 = sand.u32 %s168, 1
          %s1247 = scalar_lea.sflag [#allocation9], %s1246
          %s1248 = sand.u32 %s168, 1
          %s1249 = smul.addr %s1248, 32
          %s1250 = scalar_lea.vmem [#allocation8], %s1249
          %1252 = dma.done %s1247, 512
        $region64: #{tpu_custom_call.1} parent=55 // pred_fallthru
          _
      $region56: #{tpu_custom_call.1} parent=5 // pred_fallthru
        _
    $region6: #{tpu_custom_call.1} parent=1 // loop_footer
      %s28 = sadd.s32 1, %s24
    $region7: #{tpu_custom_call.1} parent=1 // loop_footer_branch
      %23 = sbr.rel target = $region3
    $region8: #{tpu_custom_call.1} parent=1 // loop_exit
      _
    %1253 = vsyncpa [#allocation3], 1
    %s1254 = scalar_lea.sflag [#allocation3], 1
    %1255 = vsyncpa %s1254, 1
    %1256 = vsyncpa [#allocation6], 1
    %s1257 = scalar_lea.sflag [#allocation6], 1
    %1258 = vsyncpa %s1257, 1
    %1259 = vsyncpa [#allocation4], 1
    %s1260 = scalar_lea.sflag [#allocation4], 1
    %1261 = vsyncpa %s1260, 1
    %1262 = vsyncpa [#allocation9], 1
    %s1263 = scalar_lea.sflag [#allocation9], 1
    %1264 = vsyncpa %s1263, 1

</llo_original>
